<compile_context>
chip_gen: v5e
topology: v5e:2x2
jax: 0.10.0
libtpu: 0.0.40
codegen_flags: <defaults>
</compile_context>

<pallas_src>
import math
import functools

import jax
import jax.numpy as jnp
from jax.experimental import pallas as pl
from jax.experimental.pallas import tpu as pltpu


def _round_up(x, m):
    return (x + m - 1) // m * m


def _lora_linear_kernel(x_ref, wt_ref, bias_ref, xa_ref, b_ref, o_ref, acc_ref):
    # x_ref:    (tm, tk)        input tile, bf16 (pre-cast in the wrapper)
    # wt_ref:   (tk, tn)        transposed linear-weight tile, bf16
    # bias_ref: (1,  tn)        bias tile, f32
    # xa_ref:   (tm, rank_pad)  precomputed x @ A tile, bf16 (streamed once per M tile)
    # b_ref:    (rank_pad, tn)  alpha*B tile, bf16 (streamed once per N tile)
    # o_ref:    (tm, tn)        output tile
    # acc_ref:  (tm, tn)        f32 accumulator scratch
    k = pl.program_id(2)
    nk = pl.num_programs(2)

    prod = jnp.dot(x_ref[...], wt_ref[...], preferred_element_type=jnp.float32)

    @pl.when(k == 0)
    def _():
        # Fold bias + LoRA second stage into the accumulator init: saves a
        # full (tm, tn) f32 read-modify-write vs init-then-accumulate, and the
        # LoRA matmul runs only once per (m, n) tile.
        lora = jnp.dot(xa_ref[...], b_ref[...],
                       preferred_element_type=jnp.float32)
        acc_ref[...] = prod + lora + bias_ref[...]

    @pl.when(k > 0)
    def _():
        acc_ref[...] += prod

    @pl.when(k == nk - 1)
    def _():
        o_ref[...] = acc_ref[...].astype(o_ref.dtype)


def _pick_vmem_limit(tile_bytes):
    """Derive a per-generation VMEM limit instead of hardcoding 64 MiB."""
    try:
        cap = pltpu.get_tpu_info().vmem_capacity_bytes or (64 * 1024 * 1024)
    except Exception:  # interpret mode / API drift: conservative fallback
        cap = 64 * 1024 * 1024
    want = max(2 * tile_bytes, 32 * 1024 * 1024)
    return int(min(want, (cap * 3) // 4))   # always leave Mosaic headroom


def prepare_lora_linear_params(w, b, A, B, alpha, *,
                               compute_dtype=jnp.bfloat16,
                               tn_target=512, tk_target=512):
    """One-time parameter prep (hoisted out of the hot path).

    w: (out_dim, in_dim) PyTorch layout, b: (out_dim,),
    A: (in_dim, rank), B: (rank, out_dim).
    Transposes W, folds alpha into B, zero-pads to tile multiples, casts the
    streamed operands to bf16.
    """
    out_dim, in_dim = w.shape
    rank = A.shape[1]

    tn = min(tn_target, _round_up(out_dim, 128))
    tk = min(tk_target, _round_up(in_dim, 128))
    in_pad = _round_up(in_dim, tk)
    out_pad = _round_up(out_dim, tn)
    rank_pad = _round_up(rank, 128)   # lane-dense LoRA intermediates

    wt = jnp.transpose(w)                                   # (in, out), ONCE
    wt = jnp.pad(wt, ((0, in_pad - in_dim), (0, out_pad - out_dim)))
    wt = wt.astype(compute_dtype)
    # NOTE: for decode-sized M the W stream dominates; int8 (v5e/v6e) or fp8
    # (v7x) weight storage with per-channel scales would halve it again if the
    # accuracy budget allows.

    bias = jnp.pad(jnp.asarray(b, jnp.float32).reshape(1, out_dim),
                   ((0, 0), (0, out_pad - out_dim)))

    A_p = jnp.pad(jnp.asarray(A, jnp.float32),
                  ((0, in_pad - in_dim), (0, rank_pad - rank)))
    A_p = A_p.astype(compute_dtype)

    B_scaled = jnp.asarray(B, jnp.float32) * float(alpha)   # fold alpha into B
    B_p = jnp.pad(B_scaled, ((0, rank_pad - rank), (0, out_pad - out_dim)))
    B_p = B_p.astype(compute_dtype)

    return {
        "wt": wt, "bias": bias, "A": A_p, "B": B_p,
        "meta": dict(in_dim=in_dim, out_dim=out_dim,
                     in_pad=in_pad, out_pad=out_pad,
                     tn=tn, tk=tk, rank_pad=rank_pad,
                     compute_dtype=compute_dtype),
    }


def lora_linear_apply(x, params, *, tm_target=512, out_dtype=None):
    """Hot path: y = x @ W^T + b + alpha * ((x @ A) @ B), x: (..., in_dim)."""
    meta = params["meta"]
    in_dim, out_dim = meta["in_dim"], meta["out_dim"]
    in_pad, out_pad = meta["in_pad"], meta["out_pad"]
    tn, tk, rank_pad = meta["tn"], meta["tk"], meta["rank_pad"]
    compute_dtype = meta["compute_dtype"]

    *lead, xin = x.shape
    assert xin == in_dim
    M = math.prod(lead) if lead else 1
    out_dtype = x.dtype if out_dtype is None else out_dtype

    # Multiple of 16 (bf16 sublane packing); cap at ceil(M/2) so there are at
    # least two M tiles whenever M permits (keeps both v7x TensorCores busy).
    tm = min(tm_target, max(16, _round_up((M + 1) // 2, 16)))
    m_pad = _round_up(M, tm)

    # Pre-cast x to bf16 once (halves the x HBM stream and VMEM buffers).
    x2d = x.reshape(M, in_dim).astype(compute_dtype)
    if m_pad != M or in_pad != in_dim:
        x2d = jnp.pad(x2d, ((0, m_pad - M), (0, in_pad - in_dim)))

    # LoRA first stage: tiny (M, in) @ (in, rank_pad) GEMM precomputed once
    # per call (perf-review restructure).  Streamed into the kernel once per
    # M tile; removes the A re-stream and the cross-N carried scratch.
    xa = jnp.dot(x2d, params["A"], preferred_element_type=jnp.float32)
    xa = xa.astype(compute_dtype)

    grid = (m_pad // tm, out_pad // tn, in_pad // tk)

    itemsize = jnp.dtype(compute_dtype).itemsize
    out_itemsize = jnp.dtype(out_dtype).itemsize
    tile_bytes = (
        2 * (tm * tk + tk * tn + tm * rank_pad + rank_pad * tn) * itemsize  # dbl-buffered inputs
        + 2 * tn * 4                                                        # bias
        + 2 * tm * tn * out_itemsize                                        # output dbl buffer
        + tm * tn * 4                                                       # f32 accumulator
    )

    out = pl.pallas_call(
        _lora_linear_kernel,
        out_shape=jax.ShapeDtypeStruct((m_pad, out_pad), out_dtype),
        grid_spec=pltpu.PrefetchScalarGridSpec(
            num_scalar_prefetch=0,
            grid=grid,
            in_specs=[
                # If profiling on v6e shows exposed DMA at (m, n) boundaries,
                # add pipeline_mode=pl.Buffered(3) on the x / W^T specs.
                pl.BlockSpec((tm, tk), lambda m, n, k: (m, k)),          # x
                pl.BlockSpec((tk, tn), lambda m, n, k: (k, n)),          # W^T
                pl.BlockSpec((1, tn), lambda m, n, k: (0, n)),           # bias
                pl.BlockSpec((tm, rank_pad), lambda m, n, k: (m, 0)),    # x @ A
                pl.BlockSpec((rank_pad, tn), lambda m, n, k: (0, n)),    # alpha*B
            ],
            out_specs=pl.BlockSpec((tm, tn), lambda m, n, k: (m, n)),
            scratch_shapes=[
                pltpu.VMEM((tm, tn), jnp.float32),   # f32 output accumulator
            ],
        ),
        compiler_params=pltpu.CompilerParams(
            # No cross-N carried state anymore -> both M and N are megacore-
            # shardable; K is the reduction axis (accumulator carried).
            dimension_semantics=("parallel", "parallel", "arbitrary"),
            vmem_limit_bytes=_pick_vmem_limit(tile_bytes),
        ),
    )(x2d, params["wt"], params["bias"], xa, params["B"])

    out = out[:M, :out_dim]
    return out.reshape(*lead, out_dim)


def linear_with_lora(x, w, b, A, B, alpha, **kwargs):
    """Convenience one-shot wrapper (prep + apply)."""
    params = prepare_lora_linear_params(w, b, A, B, alpha, **kwargs)
    return lora_linear_apply(x, params)


if __name__ == "__main__":
    # Small deterministic setup consistent with the module's forward.
    batch, seq, in_dim, out_dim, rank = 2, 8, 32, 32, 4
    alpha = 2.0

    key = jax.random.PRNGKey(0)
    kx, kw, kb, ka, kb2 = jax.random.split(key, 5)

    x = jax.random.normal(kx, (batch, seq, in_dim), dtype=jnp.float32)

    # nn.Linear params (PyTorch layout: weight (out, in), bias (out,)),
    # kaiming_uniform(a=sqrt(5)) with fan_in = in_dim.
    gain = math.sqrt(2.0 / (1.0 + 5.0))
    wbound = gain * math.sqrt(3.0 / in_dim)
    w = jax.random.uniform(kw, (out_dim, in_dim), minval=-wbound,
                           maxval=wbound, dtype=jnp.float32)
    bbound = 1.0 / math.sqrt(in_dim)
    b = jax.random.uniform(kb, (out_dim,), minval=-bbound, maxval=bbound,
                           dtype=jnp.float32)

    # LoRA params: A kaiming_uniform (torch fan_in = rank), B zeros (torch init).
    abound = gain * math.sqrt(3.0 / rank)
    A = jax.random.uniform(ka, (in_dim, rank), minval=-abound, maxval=abound,
                           dtype=jnp.float32)
    B = jnp.zeros((rank, out_dim), dtype=jnp.float32)

    def ref(x_, B_):
        return x_ @ w.T + b + alpha * ((x_ @ A) @ B_)

    # 1) Module-default init (B = 0): LoRA path contributes nothing.
    params = prepare_lora_linear_params(w, b, A, B, alpha)
    y = jax.block_until_ready(lora_linear_apply(x, params))
    assert y.shape == (batch, seq, out_dim)
    # bf16 MXU operands -> looser tolerance vs the f32 reference.
    assert jnp.allclose(y, ref(x, B), atol=5e-2, rtol=5e-2), "mismatch (B=0)"

    # 2) Non-zero B to exercise the LoRA path (and alpha folding).
    B2 = 0.05 * jax.random.normal(kb2, (rank, out_dim), dtype=jnp.float32)
    params2 = prepare_lora_linear_params(w, b, A, B2, alpha)
    y2 = jax.block_until_ready(lora_linear_apply(x, params2))
    assert jnp.allclose(y2, ref(x, B2), atol=5e-2, rtol=5e-2), "mismatch (B!=0)"

    # 3) M not a multiple of the tile (exercise M padding / slicing).
    x_odd = jax.random.normal(kx, (10, in_dim), dtype=jnp.float32)
    y3 = jax.block_until_ready(lora_linear_apply(x_odd, params2))
    assert y3.shape == (10, out_dim)
    assert jnp.allclose(y3, ref(x_odd, B2), atol=5e-2, rtol=5e-2), "mismatch (odd M)"

    print("KERNEL_OK")
</pallas_src>

<mosaic_0001>
module attributes {stable_mosaic.version = 11 : i64} {
  func.func @_lora_linear_kernel(%arg0: i32, %arg1: i32, %arg2: i32, %arg3: memref<16x128xbf16, #tpu.memory_space<vmem>>, %arg4: memref<128x128xbf16, #tpu.memory_space<vmem>>, %arg5: memref<1x128xf32, #tpu.memory_space<vmem>>, %arg6: memref<16x128xbf16, #tpu.memory_space<vmem>>, %arg7: memref<128x128xbf16, #tpu.memory_space<vmem>>, %arg8: memref<16x128xf32, #tpu.memory_space<vmem>>, %arg9: memref<16x128xf32, #tpu.memory_space<vmem>>) attributes {dimension_semantics = [#tpu.dimension_semantics<parallel>, #tpu.dimension_semantics<parallel>, #tpu.dimension_semantics<arbitrary>], iteration_bounds = array<i64: 1, 1, 1>, scalar_prefetch = 0 : i64, scratch_operands = 1 : i64, tpu.core_type = #tpu.core_type<tc>, window_params = [{transform_indices = @transform_0, window_bounds = array<i64: 16, 128>}, {transform_indices = @transform_1, window_bounds = array<i64: 128, 128>}, {transform_indices = @transform_2, window_bounds = array<i64: 1, 128>}, {transform_indices = @transform_3, window_bounds = array<i64: 16, 128>}, {transform_indices = @transform_4, window_bounds = array<i64: 128, 128>}, {transform_indices = @transform_5, window_bounds = array<i64: 16, 128>}]} {
    %c0 = arith.constant 0 : index
    %c0_0 = arith.constant 0 : index
    %0 = vector.load %arg3[%c0, %c0_0] : memref<16x128xbf16, #tpu.memory_space<vmem>>, vector<16x128xbf16>
    %c0_1 = arith.constant 0 : index
    %c0_2 = arith.constant 0 : index
    %1 = vector.load %arg4[%c0_1, %c0_2] : memref<128x128xbf16, #tpu.memory_space<vmem>>, vector<128x128xbf16>
    %cst = arith.constant dense<0.000000e+00> : vector<16x128xf32>
    %2 = tpu.matmul %0, %1, %cst {dimension_numbers = #tpu.dot_dimension_numbers<[1], [0], [0], [1], [0, 0, 1, 1], [], []>} : vector<16x128xbf16>, vector<128x128xbf16>, vector<16x128xf32> -> vector<16x128xf32>
    %c0_i32 = arith.constant 0 : i32
    %3 = arith.cmpi eq, %arg2, %c0_i32 : i32
    %4 = arith.extui %3 : i1 to i32
    %c0_i32_3 = arith.constant 0 : i32
    %5 = arith.cmpi ne, %4, %c0_i32_3 : i32
    scf.if %5 {
      %c0_8 = arith.constant 0 : index
      %c0_9 = arith.constant 0 : index
      %12 = vector.load %arg6[%c0_8, %c0_9] : memref<16x128xbf16, #tpu.memory_space<vmem>>, vector<16x128xbf16>
      %c0_10 = arith.constant 0 : index
      %c0_11 = arith.constant 0 : index
      %13 = vector.load %arg7[%c0_10, %c0_11] : memref<128x128xbf16, #tpu.memory_space<vmem>>, vector<128x128xbf16>
      %cst_12 = arith.constant dense<0.000000e+00> : vector<16x128xf32>
      %14 = tpu.matmul %12, %13, %cst_12 {dimension_numbers = #tpu.dot_dimension_numbers<[1], [0], [0], [1], [0, 0, 1, 1], [], []>} : vector<16x128xbf16>, vector<128x128xbf16>, vector<16x128xf32> -> vector<16x128xf32>
      %15 = arith.addf %2, %14 : vector<16x128xf32>
      %c0_13 = arith.constant 0 : index
      %c0_14 = arith.constant 0 : index
      %16 = vector.load %arg5[%c0_13, %c0_14] : memref<1x128xf32, #tpu.memory_space<vmem>>, vector<1x128xf32>
      %17 = vector.broadcast %16 : vector<1x128xf32> to vector<16x128xf32>
      %18 = arith.addf %15, %17 : vector<16x128xf32>
      %c0_15 = arith.constant 0 : index
      %c0_16 = arith.constant 0 : index
      %19 = vector.load %arg9[%c0_15, %c0_16] : memref<16x128xf32, #tpu.memory_space<vmem>>, vector<16x128xf32>
      tpu.vector_store %arg9[%c0_15, %c0_16], %18 {strides = array<i32>} : memref<16x128xf32, #tpu.memory_space<vmem>>, vector<16x128xf32>,
    } else {
    }
    %c0_i32_4 = arith.constant 0 : i32
    %6 = arith.cmpi sgt, %arg2, %c0_i32_4 : i32
    %7 = arith.extui %6 : i1 to i32
    %c0_i32_5 = arith.constant 0 : i32
    %8 = arith.cmpi ne, %7, %c0_i32_5 : i32
    scf.if %8 {
      %c0_8 = arith.constant 0 : index
      %c0_9 = arith.constant 0 : index
      %12 = vector.load %arg9[%c0_8, %c0_9] : memref<16x128xf32, #tpu.memory_space<vmem>>, vector<16x128xf32>
      %13 = arith.addf %12, %2 : vector<16x128xf32>
      %c0_10 = arith.constant 0 : index
      %c0_11 = arith.constant 0 : index
      %14 = vector.load %arg9[%c0_10, %c0_11] : memref<16x128xf32, #tpu.memory_space<vmem>>, vector<16x128xf32>
      tpu.vector_store %arg9[%c0_10, %c0_11], %13 {strides = array<i32>} : memref<16x128xf32, #tpu.memory_space<vmem>>, vector<16x128xf32>,
    } else {
    }
    %c0_i32_6 = arith.constant 0 : i32
    %9 = arith.cmpi eq, %arg2, %c0_i32_6 : i32
    %10 = arith.extui %9 : i1 to i32
    %c0_i32_7 = arith.constant 0 : i32
    %11 = arith.cmpi ne, %10, %c0_i32_7 : i32
    scf.if %11 {
      %c0_8 = arith.constant 0 : index
      %c0_9 = arith.constant 0 : index
      %12 = vector.load %arg9[%c0_8, %c0_9] : memref<16x128xf32, #tpu.memory_space<vmem>>, vector<16x128xf32>
      %c0_10 = arith.constant 0 : index
      %c0_11 = arith.constant 0 : index
      %13 = vector.load %arg8[%c0_10, %c0_11] : memref<16x128xf32, #tpu.memory_space<vmem>>, vector<16x128xf32>
      tpu.vector_store %arg8[%c0_10, %c0_11], %12 {strides = array<i32>} : memref<16x128xf32, #tpu.memory_space<vmem>>, vector<16x128xf32>,
    } else {
    }
    return
  }
  func.func @transform_0(%arg0: i32, %arg1: i32, %arg2: i32) -> (i32, i32) {
    %c0_i32 = arith.constant 0 : i32
    return %arg0, %arg2 : i32, i32
  }
  func.func @transform_1(%arg0: i32, %arg1: i32, %arg2: i32) -> (i32, i32) {
    %c0_i32 = arith.constant 0 : i32
    return %arg2, %arg1 : i32, i32
  }
  func.func @transform_2(%arg0: i32, %arg1: i32, %arg2: i32) -> (i32, i32) {
    %c0_i32 = arith.constant 0 : i32
    %c0_i32_0 = arith.constant 0 : i32
    return %c0_i32, %arg1 : i32, i32
  }
  func.func @transform_3(%arg0: i32, %arg1: i32, %arg2: i32) -> (i32, i32) {
    %c0_i32 = arith.constant 0 : i32
    %c0_i32_0 = arith.constant 0 : i32
    return %arg0, %c0_i32 : i32, i32
  }
  func.func @transform_4(%arg0: i32, %arg1: i32, %arg2: i32) -> (i32, i32) {
    %c0_i32 = arith.constant 0 : i32
    %c0_i32_0 = arith.constant 0 : i32
    return %c0_i32, %arg1 : i32, i32
  }
  func.func @transform_5(%arg0: i32, %arg1: i32, %arg2: i32) -> (i32, i32) {
    %c0_i32 = arith.constant 0 : i32
    return %arg0, %arg1 : i32, i32
  }
}

</mosaic_0001>

<llo_original>
// kernel: tpu_custom_call.1
$region0: #{tpu_custom_call.1}
  #allocation0 [shape = 'u32[]', space=smem, size = 0x4, offset = 0x4, fixed_abs, tag = 'smem constant byte address 0x4 - core index']
  #allocation1 [shape = 'u32[72,128]{1,0:T(1,128)}', space=vmem, size = 0x9000, scoped, tag = 'internal scratch']
  #allocation2 [shape = 'f32[16,128]{1,0:T(8,128)}', space=vmem, size = 0x2000, scoped, tag = 'scratch operand']
  %s0 = inlined_call_operand.hbm [shape: bf16[16,128], index: 0, kind: input, shape index: {}]
  %s1 = inlined_call_operand.hbm [shape: bf16[128,128], index: 1, kind: input, shape index: {}]
  %s2 = inlined_call_operand.vmem [shape: f32[1,128], index: 2, kind: input, shape index: {}]
  %s3 = inlined_call_operand.hbm [shape: bf16[16,128], index: 3, kind: input, shape index: {}]
  %s4 = inlined_call_operand.hbm [shape: bf16[128,128], index: 4, kind: input, shape index: {}]
  %s5 = inlined_call_operand.hbm [shape: f32[16,128], index: 5, kind: output, shape index: {}]
  %s6 = sld [smem:[#allocation0]]
  $region58: #{tpu_custom_call.1} parent=0
    _
  %s8 = ssub.s32 1, %s6
  %s9 = scalar_select 0, %s8, %s6
  $region1: #{tpu_custom_call.1} parent=0
    #allocation3 [shape = 'u8[4096]{0}', space=vmem, size = 0x1000, scoped, tag = 'input window, operand 0, single buffered']
    #allocation4 [shape = 's32[1]{0}', space=sflag, size = 0x4, scoped, tag = 'scoped memory for tpu_custom_call.1']
    #allocation5 [shape = 's32[1]{0}', space=sflag, size = 0x4, scoped, tag = 'scoped memory for tpu_custom_call.1']
    #allocation6 [shape = 'u8[32768]{0}', space=vmem, size = 0x8000, scoped, tag = 'input window, operand 1, single buffered']
    #allocation7 [shape = 's32[1]{0}', space=sflag, size = 0x4, scoped, tag = 'scoped memory for tpu_custom_call.1']
    #allocation8 [shape = 'u8[4096]{0}', space=vmem, size = 0x1000, scoped, tag = 'input window, operand 3, single buffered']
    #allocation9 [shape = 'u8[32768]{0}', space=vmem, size = 0x8000, scoped, tag = 'input window, operand 4, single buffered']
    #allocation10 [shape = 's32[1]{0}', space=sflag, size = 0x4, scoped, tag = 'scoped memory for tpu_custom_call.1']
    #allocation11 [shape = 'u8[8192]{0}', space=vmem, size = 0x2000, scoped, tag = 'output window, operand 0, single buffered']
    %10 = vsyncpa [#allocation4], 0
    %11 = vsyncpa [#allocation7], 0
    %12 = vsyncpa [#allocation10], 0
    %13 = vsyncpa [#allocation5], 0
    // Predicated region
    $region2: #{tpu_custom_call.1} parent=1 // pred_check
      _
    $region3: #{tpu_custom_call.1} parent=1 // pred_check_branch
      %15 = sbr.rel (0) target = $region5
    $region4: #{tpu_custom_call.1} parent=1 // pred_region
      %17 = vsyncadd [#allocation4], 0
      %s18 = sshll.u32 %s0, 4
      %s19 = int_to_ptr.hbm [resolvable:$true] %s18
      %s20 = sshll.u32 [#allocation3], 4
      %s21 = int_to_ptr.vmem [resolvable:$true] %s20
      %26 = dma.hbm_to_vmem [thread:$0]  %s19, 128, %s21, [#allocation4], 64, 64, 4
    $region5: #{tpu_custom_call.1} parent=1 // pred_fallthru
      _
    // Predicated region
    $region6: #{tpu_custom_call.1} parent=1 // pred_check
      _
    $region7: #{tpu_custom_call.1} parent=1 // pred_check_branch
      %28 = sbr.rel (0) target = $region9
    $region8: #{tpu_custom_call.1} parent=1 // pred_region
      %30 = vsyncadd [#allocation7], 0
      %s31 = sshll.u32 %s1, 4
      %s32 = int_to_ptr.hbm [resolvable:$true] %s31
      %s33 = sshll.u32 [#allocation6], 4
      %s34 = int_to_ptr.vmem [resolvable:$true] %s33
      %39 = dma.hbm_to_vmem [thread:$0]  %s32, 1024, %s34, [#allocation7], 64, 64, 4
    $region9: #{tpu_custom_call.1} parent=1 // pred_fallthru
      _
    // Predicated region
    $region10: #{tpu_custom_call.1} parent=1 // pred_check
      _
    $region11: #{tpu_custom_call.1} parent=1 // pred_check_branch
      %41 = sbr.rel (0) target = $region13
    $region12: #{tpu_custom_call.1} parent=1 // pred_region
      _
    $region13: #{tpu_custom_call.1} parent=1 // pred_fallthru
      _
    // Predicated region
    $region14: #{tpu_custom_call.1} parent=1 // pred_check
      _
    $region15: #{tpu_custom_call.1} parent=1 // pred_check_branch
      %43 = sbr.rel (0) target = $region17
    $region16: #{tpu_custom_call.1} parent=1 // pred_region
      %45 = vsyncadd [#allocation7], 0
      %s46 = sshll.u32 %s3, 4
      %s47 = int_to_ptr.hbm [resolvable:$true] %s46
      %s48 = sshll.u32 [#allocation8], 4
      %s49 = int_to_ptr.vmem [resolvable:$true] %s48
      %54 = dma.hbm_to_vmem [thread:$0]  %s47, 128, %s49, [#allocation7], 64, 64, 4
    $region17: #{tpu_custom_call.1} parent=1 // pred_fallthru
      _
    // Predicated region
    $region18: #{tpu_custom_call.1} parent=1 // pred_check
      _
    $region19: #{tpu_custom_call.1} parent=1 // pred_check_branch
      %56 = sbr.rel (0) target = $region21
    $region20: #{tpu_custom_call.1} parent=1 // pred_region
      %58 = vsyncadd [#allocation10], 0
      %s59 = sshll.u32 %s4, 4
      %s60 = int_to_ptr.hbm [resolvable:$true] %s59
      %s61 = sshll.u32 [#allocation9], 4
      %s62 = int_to_ptr.vmem [resolvable:$true] %s61
      %67 = dma.hbm_to_vmem [thread:$0]  %s60, 1024, %s62, [#allocation10], 64, 64, 4
    $region21: #{tpu_custom_call.1} parent=1 // pred_fallthru
      _
    // Predicated region
    $region22: #{tpu_custom_call.1} parent=1 // pred_check
      _
    $region23: #{tpu_custom_call.1} parent=1 // pred_check_branch
      %69 = sbr.rel (0) target = $region25
    $region24: #{tpu_custom_call.1} parent=1 // pred_region
      %71 = dma.done [#allocation4], 128
    $region25: #{tpu_custom_call.1} parent=1 // pred_fallthru
      _
    // Predicated region
    $region26: #{tpu_custom_call.1} parent=1 // pred_check
      _
    $region27: #{tpu_custom_call.1} parent=1 // pred_check_branch
      %73 = sbr.rel (0) target = $region29
    $region28: #{tpu_custom_call.1} parent=1 // pred_region
      %75 = dma.done [#allocation7], 1024
    $region29: #{tpu_custom_call.1} parent=1 // pred_fallthru
      _
    // Predicated region
    $region30: #{tpu_custom_call.1} parent=1 // pred_check
      _
    $region31: #{tpu_custom_call.1} parent=1 // pred_check_branch
      %77 = sbr.rel (0) target = $region33
    $region32: #{tpu_custom_call.1} parent=1 // pred_region
      %79 = dma.done [#allocation7], 128
    $region33: #{tpu_custom_call.1} parent=1 // pred_fallthru
      _
    // Predicated region
    $region34: #{tpu_custom_call.1} parent=1 // pred_check
      _
    $region35: #{tpu_custom_call.1} parent=1 // pred_check_branch
      %81 = sbr.rel (0) target = $region37
    $region36: #{tpu_custom_call.1} parent=1 // pred_region
      %83 = dma.done [#allocation10], 1024
    $region37: #{tpu_custom_call.1} parent=1 // pred_fallthru
      _
    %v84 = vld [vmem:[#allocation3] sm:$0xf]
    %v85 = vld [vmem:[#allocation3 + $0x4] sm:$0xf]
    %v86 = vld [vmem:[#allocation6] sm:$0xf]
    %v87 = vld [vmem:[#allocation6 + $0x4] sm:$0xf]
    %v88 = vld [vmem:[#allocation6 + $0x8] sm:$0xf]
    %v89 = vld [vmem:[#allocation6 + $0xc] sm:$0xf]
    %v90 = vld [vmem:[#allocation6 + $0x10] sm:$0xf]
    %v91 = vld [vmem:[#allocation6 + $0x14] sm:$0xf]
    %v92 = vld [vmem:[#allocation6 + $0x18] sm:$0xf]
    %v93 = vld [vmem:[#allocation6 + $0x1c] sm:$0xf]
    %v94 = vld [vmem:[#allocation6 + $0x20] sm:$0xf]
    %v95 = vld [vmem:[#allocation6 + $0x24] sm:$0xf]
    %v96 = vld [vmem:[#allocation6 + $0x28] sm:$0xf]
    %v97 = vld [vmem:[#allocation6 + $0x2c] sm:$0xf]
    %v98 = vld [vmem:[#allocation6 + $0x30] sm:$0xf]
    %v99 = vld [vmem:[#allocation6 + $0x34] sm:$0xf]
    %v100 = vld [vmem:[#allocation6 + $0x38] sm:$0xf]
    %v101 = vld [vmem:[#allocation6 + $0x3c] sm:$0xf]
    %v104 = vunpack.c.l.b16 %v84
    %v105 = vunpack.c.l.b16 %v85
    %v106 = vpack.c.b16 %v105, %v104
    %v124 = vunpack.c.l.b16 %v86
    %v125 = vunpack.c.l.b16 %v87
    %v126 = vunpack.c.l.b16 %v88
    %v127 = vunpack.c.l.b16 %v89
    %v128 = vunpack.c.l.b16 %v90
    %v129 = vunpack.c.l.b16 %v91
    %v130 = vunpack.c.l.b16 %v92
    %v131 = vunpack.c.l.b16 %v93
    %v132 = vunpack.c.l.b16 %v94
    %v133 = vunpack.c.l.b16 %v95
    %v134 = vunpack.c.l.b16 %v96
    %v135 = vunpack.c.l.b16 %v97
    %v136 = vunpack.c.l.b16 %v98
    %v137 = vunpack.c.l.b16 %v99
    %v138 = vunpack.c.l.b16 %v100
    %v139 = vunpack.c.l.b16 %v101
    %v140 = vpack.c.b16 %v125, %v124
    %v141 = vpack.c.b16 %v127, %v126
    %v142 = vpack.c.b16 %v129, %v128
    %v143 = vpack.c.b16 %v131, %v130
    %v144 = vpack.c.b16 %v133, %v132
    %v145 = vpack.c.b16 %v135, %v134
    %v146 = vpack.c.b16 %v137, %v136
    %v147 = vpack.c.b16 %v139, %v138
    %156 = vmatpush.bf16.msra.mxu0 %v147
    %157 = vmatpush.bf16.msra.mxu0 %v146
    %158 = vmatpush.bf16.msra.mxu0 %v145
    %159 = vmatpush.bf16.msra.mxu0 %v144
    %160 = vmatpush.bf16.msra.mxu0 %v143
    %161 = vmatpush.bf16.msra.mxu0 %v142
    %162 = vmatpush.bf16.msra.mxu0 %v141
    %163 = vmatpush.bf16.msra.mxu0 %v140
    %164 = vmatmul.bf16.gmra.mxu0 %v106
    %v165 = vpop.f32.mrf.mxu0
    %v166 = vadd.f32 0.0, %v165
    %v167 = vpop.f32.mrf.mxu0
    %v168 = vadd.f32 0.0, %v167
    %169 = vdwg.mxu0
    %p170 = scmp.eq.s32.totalorder 0, 0
    // Predicated region
    $region38: #{tpu_custom_call.1} parent=1 // pred_check
      %p171 = pneg %p170
    $region39: #{tpu_custom_call.1} parent=1 // pred_check_branch
      %173 = sbr.rel (%p171) target = $region41
    $region40: #{tpu_custom_call.1} parent=1 // pred_region
      %v174 = vld [vmem:[#allocation8] sm:$0xf]
      %v175 = vld [vmem:[#allocation8 + $0x4] sm:$0xf]
      %v176 = vld [vmem:[#allocation9] sm:$0xf]
      %v177 = vld [vmem:[#allocation9 + $0x4] sm:$0xf]
      %v178 = vld [vmem:[#allocation9 + $0x8] sm:$0xf]
      %v179 = vld [vmem:[#allocation9 + $0xc] sm:$0xf]
      %v180 = vld [vmem:[#allocation9 + $0x10] sm:$0xf]
      %v181 = vld [vmem:[#allocation9 + $0x14] sm:$0xf]
      %v182 = vld [vmem:[#allocation9 + $0x18] sm:$0xf]
      %v183 = vld [vmem:[#allocation9 + $0x1c] sm:$0xf]
      %v184 = vld [vmem:[#allocation9 + $0x20] sm:$0xf]
      %v185 = vld [vmem:[#allocation9 + $0x24] sm:$0xf]
      %v186 = vld [vmem:[#allocation9 + $0x28] sm:$0xf]
      %v187 = vld [vmem:[#allocation9 + $0x2c] sm:$0xf]
      %v188 = vld [vmem:[#allocation9 + $0x30] sm:$0xf]
      %v189 = vld [vmem:[#allocation9 + $0x34] sm:$0xf]
      %v190 = vld [vmem:[#allocation9 + $0x38] sm:$0xf]
      %v191 = vld [vmem:[#allocation9 + $0x3c] sm:$0xf]
      %v194 = vunpack.c.l.b16 %v174
      %v195 = vunpack.c.l.b16 %v175
      %v196 = vpack.c.b16 %v195, %v194
      %v214 = vunpack.c.l.b16 %v176
      %v215 = vunpack.c.l.b16 %v177
      %v216 = vunpack.c.l.b16 %v178
      %v217 = vunpack.c.l.b16 %v179
      %v218 = vunpack.c.l.b16 %v180
      %v219 = vunpack.c.l.b16 %v181
      %v220 = vunpack.c.l.b16 %v182
      %v221 = vunpack.c.l.b16 %v183
      %v222 = vunpack.c.l.b16 %v184
      %v223 = vunpack.c.l.b16 %v185
      %v224 = vunpack.c.l.b16 %v186
      %v225 = vunpack.c.l.b16 %v187
      %v226 = vunpack.c.l.b16 %v188
      %v227 = vunpack.c.l.b16 %v189
      %v228 = vunpack.c.l.b16 %v190
      %v229 = vunpack.c.l.b16 %v191
      %v230 = vpack.c.b16 %v215, %v214
      %v231 = vpack.c.b16 %v217, %v216
      %v232 = vpack.c.b16 %v219, %v218
      %v233 = vpack.c.b16 %v221, %v220
      %v234 = vpack.c.b16 %v223, %v222
      %v235 = vpack.c.b16 %v225, %v224
      %v236 = vpack.c.b16 %v227, %v226
      %v237 = vpack.c.b16 %v229, %v228
      %246 = vmatpush.bf16.msra.mxu0 %v237
      %247 = vmatpush.bf16.msra.mxu0 %v236
      %248 = vmatpush.bf16.msra.mxu0 %v235
      %249 = vmatpush.bf16.msra.mxu0 %v234
      %250 = vmatpush.bf16.msra.mxu0 %v233
      %251 = vmatpush.bf16.msra.mxu0 %v232
      %252 = vmatpush.bf16.msra.mxu0 %v231
      %253 = vmatpush.bf16.msra.mxu0 %v230
      %254 = vmatmul.bf16.gmra.mxu0 %v196
      %v255 = vpop.f32.mrf.mxu0
      %v256 = vadd.f32 0.0, %v255
      %v257 = vpop.f32.mrf.mxu0
      %v258 = vadd.f32 0.0, %v257
      %259 = vdwg.mxu0
      %v260 = vadd.f32 %v166, %v256
      %v261 = vadd.f32 %v168, %v258
      %v262 = vld [vmem:[%s2] sm:$0x1]
      %v264 = vperm.slane %v262, 0
      %v266 = vadd.f32 %v260, %v264
      %v267 = vadd.f32 %v261, %v264
      %268 = vst [vmem:[#allocation2] sm:$0xff] %v266
      %269 = vst [vmem:[#allocation2 + $0x8] sm:$0xff] %v267
    $region41: #{tpu_custom_call.1} parent=1 // pred_fallthru
      _
    %p270 = scmp.gt.s32.totalorder 0, 0
    // Predicated region
    $region42: #{tpu_custom_call.1} parent=1 // pred_check
      %p271 = pneg %p270
    $region43: #{tpu_custom_call.1} parent=1 // pred_check_branch
      %273 = sbr.rel (%p271) target = $region45
    $region44: #{tpu_custom_call.1} parent=1 // pred_region
      %v274 = vld [vmem:[#allocation2] sm:$0xff]
      %v275 = vld [vmem:[#allocation2 + $0x8] sm:$0xff]
      %v276 = vadd.f32 %v274, %v166
      %v277 = vadd.f32 %v275, %v168
      %278 = vst [vmem:[#allocation2] sm:$0xff] %v276
      %279 = vst [vmem:[#allocation2 + $0x8] sm:$0xff] %v277
    $region45: #{tpu_custom_call.1} parent=1 // pred_fallthru
      _
    // Predicated region
    $region46: #{tpu_custom_call.1} parent=1 // pred_check
      %p280 = pneg %p170
    $region47: #{tpu_custom_call.1} parent=1 // pred_check_branch
      %282 = sbr.rel (%p280) target = $region49
    $region48: #{tpu_custom_call.1} parent=1 // pred_region
      %v283 = vld [vmem:[#allocation2] sm:$0xff]
      %v284 = vld [vmem:[#allocation2 + $0x8] sm:$0xff]
      %285 = vst [vmem:[#allocation11] sm:$0xff] %v283
      %286 = vst [vmem:[#allocation11 + $0x8] sm:$0xff] %v284
    $region49: #{tpu_custom_call.1} parent=1 // pred_fallthru
      _
    // Predicated region
    $region50: #{tpu_custom_call.1} parent=1 // pred_check
      _
    $region51: #{tpu_custom_call.1} parent=1 // pred_check_branch
      %288 = sbr.rel (0) target = $region53
    $region52: #{tpu_custom_call.1} parent=1 // pred_region
      %290 = vsyncadd [#allocation5], 0
      %s291 = sshll.u32 [#allocation11], 4
      %s292 = int_to_ptr.vmem [resolvable:$true] %s291
      %s293 = sshll.u32 %s5, 4
      %s294 = int_to_ptr.hbm [resolvable:$true] %s293
      %299 = dma.vmem_to_hbm [thread:$0]  %s292, 256, %s294, [#allocation5], 128, 128, 8
    $region53: #{tpu_custom_call.1} parent=1 // pred_fallthru
      _
    // Predicated region
    $region54: #{tpu_custom_call.1} parent=1 // pred_check
      _
    $region55: #{tpu_custom_call.1} parent=1 // pred_check_branch
      %301 = sbr.rel (0) target = $region57
    $region56: #{tpu_custom_call.1} parent=1 // pred_region
      %303 = dma.done [#allocation5], 256
    $region57: #{tpu_custom_call.1} parent=1 // pred_fallthru
      _
    %304 = vsyncpa [#allocation4], 1
    %305 = vsyncpa [#allocation7], 1
    %306 = vsyncpa [#allocation10], 1
    %307 = vsyncpa [#allocation5], 1

</llo_original>
